<compile_context>
chip_gen: v5e
topology: v5e:2x2
jax: 0.10.0
libtpu: 0.0.40
codegen_flags: <defaults>
</compile_context>

<pallas_src>
import jax
import jax.numpy as jnp
from jax.experimental import pallas as pl
from jax.experimental.pallas import tpu as pltpu


# ------------------------- Fused RNNUnit kernel ------------------------------

def _rnn_unit_kernel(x_ref, h0_ref,
                     enc_w_ref, enc_b_ref,
                     wih0_ref, whh0_ref, b0_ref,
                     w1cat_ref, b1_ref,
                     dec_w_ref, dec_b_ref,
                     out_ref, hn_ref):
    """Whole problem resident in VMEM; single grid point.

    x_ref:     (L*B, F)   flattened time-major input
    h0_ref:    (2, B, H)  initial hidden states
    enc_w/b:   (F, IN), (1, IN)
    wih0:      (IN, H)    layer-0 input weights
    whh0:      (H, H)     layer-0 recurrent weights
    b0:        (1, H)     b_ih0 + b_hh0 (folded)
    w1cat:     (2H, H)    [W_ih1; W_hh1] stacked along the contraction dim
    b1:        (1, H)     b_ih1 + b_hh1 (folded)
    dec_w/b:   (H, F), (1, F)
    out_ref:   (L*B, F)   decoded outputs
    hn_ref:    (2, B, H)  final hidden states
    """
    LB = x_ref.shape[0]
    B = h0_ref.shape[1]
    L = LB // B

    x = x_ref[...].astype(jnp.float32)

    # ---- Time-parallel prologue (hoisted out of the recurrence) ----
    # Encoder for all timesteps at once.
    xe = (jnp.dot(x, enc_w_ref[...], preferred_element_type=jnp.float32)
          + enc_b_ref[...])                                   # (L*B, IN)
    # Layer-0 input projection + folded biases for all timesteps at once.
    x0_all = (jnp.dot(xe, wih0_ref[...], preferred_element_type=jnp.float32)
              + b0_ref[...])                                  # (L*B, H)

    whh0 = whh0_ref[...]
    w1cat = w1cat_ref[...]
    b1 = b1_ref[...]

    h0 = h0_ref[0].astype(jnp.float32)                        # (B, H)
    h1 = h0_ref[1].astype(jnp.float32)                        # (B, H)

    # ---- Sequential recurrence: fully unrolled, 2 matmuls per step ----
    outs = []
    for t in range(L):
        x0_t = x0_all[t * B:(t + 1) * B, :]                   # static slice (B, H)
        h0 = jnp.tanh(
            x0_t + jnp.dot(h0, whh0, preferred_element_type=jnp.float32))
        h1_in = jnp.concatenate([h0, h1], axis=1)             # (B, 2H)
        h1 = jnp.tanh(
            jnp.dot(h1_in, w1cat, preferred_element_type=jnp.float32) + b1)
        outs.append(h1)

    # ---- Time-parallel epilogue: decode the whole slab, write once ----
    rnn_out = jnp.concatenate(outs, axis=0)                   # (L*B, H)
    dec = (jnp.dot(rnn_out, dec_w_ref[...], preferred_element_type=jnp.float32)
           + dec_b_ref[...])                                  # (L*B, F)

    out_ref[...] = dec.astype(out_ref.dtype)
    hn_ref[...] = jnp.stack([h0, h1], axis=0).astype(hn_ref.dtype)


def rnn_unit_forward(x, prev_hidden, params):
    """x: (L, B, F), prev_hidden: (2, B, H) -> (out (L, B, F), h_n (2, B, H))."""
    enc_w, enc_b, rnn_params, dec_w, dec_b = params
    (wih0, whh0, bih0, bhh0, wih1, whh1, bih1, bhh1) = rnn_params
    L, B, F = x.shape
    H = whh0.shape[0]
    NL = prev_hidden.shape[0]

    # Offline parameter packing (pure JAX, once per call):
    b0 = bih0 + bhh0                                   # fold layer-0 biases
    w1cat = jnp.concatenate([wih1, whh1], axis=0)      # (2H, H) stacked weights
    b1 = bih1 + bhh1                                   # fold layer-1 biases

    x2d = x.reshape(L * B, F)

    out2d, hn = pl.pallas_call(
        _rnn_unit_kernel,
        out_shape=(jax.ShapeDtypeStruct((L * B, F), x.dtype),
                   jax.ShapeDtypeStruct((NL, B, H), prev_hidden.dtype)),
        # No grid: everything (weights + activations, ~25 KB) lives in VMEM and
        # the recurrence runs as an unrolled in-kernel loop.
    )(x2d, prev_hidden, enc_w, enc_b, wih0, whh0, b0, w1cat, b1, dec_w, dec_b)

    return out2d.reshape(L, B, F), hn


# ------------------------------ Pure-JAX ref ----------------------------------

def ref_forward(x, prev_hidden, params):
    enc_w, enc_b, rnn_params, dec_w, dec_b = params
    (wih0, whh0, bih0, bhh0, wih1, whh1, bih1, bhh1) = rnn_params
    L, B, F = x.shape
    H = whh0.shape[0]
    xe = (x.reshape(L * B, F) @ enc_w + enc_b).reshape(L, B, -1)
    h0, h1 = prev_hidden[0], prev_hidden[1]
    outs = []
    for t in range(L):
        h0 = jnp.tanh(xe[t] @ wih0 + bih0 + h0 @ whh0 + bhh0)
        h1 = jnp.tanh(h0 @ wih1 + bih1 + h1 @ whh1 + bhh1)
        outs.append(h1)
    out = jnp.stack(outs)
    hn = jnp.stack([h0, h1])
    dec = (out.reshape(L * B, H) @ dec_w + dec_b).reshape(L, B, F)
    return dec, hn


# ---------------------------------- Main --------------------------------------

if __name__ == "__main__":
    L, B, F = 8, 2, 16          # seq, batch, features
    IN, H = 32, 32              # input_size, hidden_size
    NL = 2                      # num_layers

    key = jax.random.PRNGKey(0)
    ks = jax.random.split(key, 16)

    # Deterministic synthetic parameters (already transposed to (in, out)).
    enc_w = jax.random.normal(ks[0], (F, IN), jnp.float32) * 0.1
    enc_b = jax.random.normal(ks[1], (1, IN), jnp.float32) * 0.1
    wih0 = jax.random.normal(ks[2], (IN, H), jnp.float32) * 0.1
    whh0 = jax.random.normal(ks[3], (H, H), jnp.float32) * 0.1
    bih0 = jax.random.normal(ks[4], (1, H), jnp.float32) * 0.1
    bhh0 = jax.random.normal(ks[5], (1, H), jnp.float32) * 0.1
    wih1 = jax.random.normal(ks[6], (H, H), jnp.float32) * 0.1
    whh1 = jax.random.normal(ks[7], (H, H), jnp.float32) * 0.1
    bih1 = jax.random.normal(ks[8], (1, H), jnp.float32) * 0.1
    bhh1 = jax.random.normal(ks[9], (1, H), jnp.float32) * 0.1
    dec_w = jax.random.normal(ks[10], (H, F), jnp.float32) * 0.1
    dec_b = jax.random.normal(ks[11], (1, F), jnp.float32) * 0.1

    rnn_params = (wih0, whh0, bih0, bhh0, wih1, whh1, bih1, bhh1)
    params = (enc_w, enc_b, rnn_params, dec_w, dec_b)

    x = jax.random.normal(ks[12], (L, B, F), jnp.float32)
    prev_hidden = jax.random.normal(ks[13], (NL, B, H), jnp.float32)

    out, cur_hidden = rnn_unit_forward(x, prev_hidden, params)
    out = jax.block_until_ready(out)
    cur_hidden = jax.block_until_ready(cur_hidden)

    ref_out, ref_hn = ref_forward(x, prev_hidden, params)
    assert out.shape == (L, B, F) and cur_hidden.shape == (NL, B, H)
    assert jnp.allclose(out, ref_out, atol=1e-5, rtol=1e-5)
    assert jnp.allclose(cur_hidden, ref_hn, atol=1e-5, rtol=1e-5)

    print("KERNEL_OK")
</pallas_src>

<mosaic_0001>
module attributes {stable_mosaic.version = 11 : i64} {
  func.func @_rnn_unit_kernel(%arg0: memref<16x16xf32, #tpu.memory_space<vmem>>, %arg1: memref<2x2x32xf32, #tpu.memory_space<vmem>>, %arg2: memref<16x32xf32, #tpu.memory_space<vmem>>, %arg3: memref<1x32xf32, #tpu.memory_space<vmem>>, %arg4: memref<32x32xf32, #tpu.memory_space<vmem>>, %arg5: memref<32x32xf32, #tpu.memory_space<vmem>>, %arg6: memref<1x32xf32, #tpu.memory_space<vmem>>, %arg7: memref<64x32xf32, #tpu.memory_space<vmem>>, %arg8: memref<1x32xf32, #tpu.memory_space<vmem>>, %arg9: memref<32x16xf32, #tpu.memory_space<vmem>>, %arg10: memref<1x16xf32, #tpu.memory_space<vmem>>, %arg11: memref<16x16xf32, #tpu.memory_space<vmem>>, %arg12: memref<2x2x32xf32, #tpu.memory_space<vmem>>) attributes {dimension_semantics = [], scalar_prefetch = 0 : i64, scratch_operands = 0 : i64, tpu.core_type = #tpu.core_type<tc>} {
    %c0 = arith.constant 0 : index
    %c0_0 = arith.constant 0 : index
    %0 = vector.load %arg0[%c0, %c0_0] : memref<16x16xf32, #tpu.memory_space<vmem>>, vector<16x16xf32>
    %c0_1 = arith.constant 0 : index
    %c0_2 = arith.constant 0 : index
    %1 = vector.load %arg2[%c0_1, %c0_2] : memref<16x32xf32, #tpu.memory_space<vmem>>, vector<16x32xf32>
    %cst = arith.constant dense<0.000000e+00> : vector<16x32xf32>
    %2 = tpu.matmul %0, %1, %cst {dimension_numbers = #tpu.dot_dimension_numbers<[1], [0], [0], [1], [0, 0, 1, 1], [], []>} : vector<16x16xf32>, vector<16x32xf32>, vector<16x32xf32> -> vector<16x32xf32>
    %c0_3 = arith.constant 0 : index
    %c0_4 = arith.constant 0 : index
    %3 = vector.load %arg3[%c0_3, %c0_4] : memref<1x32xf32, #tpu.memory_space<vmem>>, vector<1x32xf32>
    %4 = vector.broadcast %3 : vector<1x32xf32> to vector<16x32xf32>
    %5 = arith.addf %2, %4 : vector<16x32xf32>
    %c0_5 = arith.constant 0 : index
    %c0_6 = arith.constant 0 : index
    %6 = vector.load %arg4[%c0_5, %c0_6] : memref<32x32xf32, #tpu.memory_space<vmem>>, vector<32x32xf32>
    %cst_7 = arith.constant dense<0.000000e+00> : vector<16x32xf32>
    %7 = tpu.matmul %5, %6, %cst_7 {dimension_numbers = #tpu.dot_dimension_numbers<[1], [0], [0], [1], [0, 0, 1, 1], [], []>} : vector<16x32xf32>, vector<32x32xf32>, vector<16x32xf32> -> vector<16x32xf32>
    %c0_8 = arith.constant 0 : index
    %c0_9 = arith.constant 0 : index
    %8 = vector.load %arg6[%c0_8, %c0_9] : memref<1x32xf32, #tpu.memory_space<vmem>>, vector<1x32xf32>
    %9 = vector.broadcast %8 : vector<1x32xf32> to vector<16x32xf32>
    %10 = arith.addf %7, %9 : vector<16x32xf32>
    %c0_10 = arith.constant 0 : index
    %c0_11 = arith.constant 0 : index
    %11 = vector.load %arg5[%c0_10, %c0_11] : memref<32x32xf32, #tpu.memory_space<vmem>>, vector<32x32xf32>
    %c0_12 = arith.constant 0 : index
    %c0_13 = arith.constant 0 : index
    %12 = vector.load %arg7[%c0_12, %c0_13] : memref<64x32xf32, #tpu.memory_space<vmem>>, vector<64x32xf32>
    %c0_14 = arith.constant 0 : index
    %c0_15 = arith.constant 0 : index
    %13 = vector.load %arg8[%c0_14, %c0_15] : memref<1x32xf32, #tpu.memory_space<vmem>>, vector<1x32xf32>
    %c0_16 = arith.constant 0 : index
    %c0_17 = arith.constant 0 : index
    %c0_18 = arith.constant 0 : index
    %14 = vector.load %arg1[%c0_16, %c0_17, %c0_18] : memref<2x2x32xf32, #tpu.memory_space<vmem>>, vector<1x2x32xf32>
    %15 = vector.shape_cast %14 : vector<1x2x32xf32> to vector<2x32xf32>
    %c1 = arith.constant 1 : index
    %c0_19 = arith.constant 0 : index
    %c0_20 = arith.constant 0 : index
    %16 = vector.load %arg1[%c1, %c0_19, %c0_20] : memref<2x2x32xf32, #tpu.memory_space<vmem>>, vector<1x2x32xf32>
    %17 = vector.shape_cast %16 : vector<1x2x32xf32> to vector<2x32xf32>
    %18 = vector.extract_strided_slice %10 {offsets = [0, 0], sizes = [2, 32], strides = [1, 1]} : vector<16x32xf32> to vector<2x32xf32>
    %cst_21 = arith.constant dense<0.000000e+00> : vector<2x32xf32>
    %19 = tpu.matmul %15, %11, %cst_21 {dimension_numbers = #tpu.dot_dimension_numbers<[1], [0], [0], [1], [0, 0, 1, 1], [], []>} : vector<2x32xf32>, vector<32x32xf32>, vector<2x32xf32> -> vector<2x32xf32>
    %20 = arith.addf %18, %19 : vector<2x32xf32>
    %21 = math.tanh %20 : vector<2x32xf32>
    %22 = tpu.concatenate %21, %17 in 1 : vector<2x32xf32>, vector<2x32xf32> -> vector<2x64xf32>
    %cst_22 = arith.constant dense<0.000000e+00> : vector<2x32xf32>
    %23 = tpu.matmul %22, %12, %cst_22 {dimension_numbers = #tpu.dot_dimension_numbers<[1], [0], [0], [1], [0, 0, 1, 1], [], []>} : vector<2x64xf32>, vector<64x32xf32>, vector<2x32xf32> -> vector<2x32xf32>
    %24 = vector.broadcast %13 : vector<1x32xf32> to vector<2x32xf32>
    %25 = arith.addf %23, %24 : vector<2x32xf32>
    %26 = math.tanh %25 : vector<2x32xf32>
    %27 = vector.extract_strided_slice %10 {offsets = [2, 0], sizes = [2, 32], strides = [1, 1]} : vector<16x32xf32> to vector<2x32xf32>
    %cst_23 = arith.constant dense<0.000000e+00> : vector<2x32xf32>
    %28 = tpu.matmul %21, %11, %cst_23 {dimension_numbers = #tpu.dot_dimension_numbers<[1], [0], [0], [1], [0, 0, 1, 1], [], []>} : vector<2x32xf32>, vector<32x32xf32>, vector<2x32xf32> -> vector<2x32xf32>
    %29 = arith.addf %27, %28 : vector<2x32xf32>
    %30 = math.tanh %29 : vector<2x32xf32>
    %31 = tpu.concatenate %30, %26 in 1 : vector<2x32xf32>, vector<2x32xf32> -> vector<2x64xf32>
    %cst_24 = arith.constant dense<0.000000e+00> : vector<2x32xf32>
    %32 = tpu.matmul %31, %12, %cst_24 {dimension_numbers = #tpu.dot_dimension_numbers<[1], [0], [0], [1], [0, 0, 1, 1], [], []>} : vector<2x64xf32>, vector<64x32xf32>, vector<2x32xf32> -> vector<2x32xf32>
    %33 = vector.broadcast %13 : vector<1x32xf32> to vector<2x32xf32>
    %34 = arith.addf %32, %33 : vector<2x32xf32>
    %35 = math.tanh %34 : vector<2x32xf32>
    %36 = vector.extract_strided_slice %10 {offsets = [4, 0], sizes = [2, 32], strides = [1, 1]} : vector<16x32xf32> to vector<2x32xf32>
    %cst_25 = arith.constant dense<0.000000e+00> : vector<2x32xf32>
    %37 = tpu.matmul %30, %11, %cst_25 {dimension_numbers = #tpu.dot_dimension_numbers<[1], [0], [0], [1], [0, 0, 1, 1], [], []>} : vector<2x32xf32>, vector<32x32xf32>, vector<2x32xf32> -> vector<2x32xf32>
    %38 = arith.addf %36, %37 : vector<2x32xf32>
    %39 = math.tanh %38 : vector<2x32xf32>
    %40 = tpu.concatenate %39, %35 in 1 : vector<2x32xf32>, vector<2x32xf32> -> vector<2x64xf32>
    %cst_26 = arith.constant dense<0.000000e+00> : vector<2x32xf32>
    %41 = tpu.matmul %40, %12, %cst_26 {dimension_numbers = #tpu.dot_dimension_numbers<[1], [0], [0], [1], [0, 0, 1, 1], [], []>} : vector<2x64xf32>, vector<64x32xf32>, vector<2x32xf32> -> vector<2x32xf32>
    %42 = vector.broadcast %13 : vector<1x32xf32> to vector<2x32xf32>
    %43 = arith.addf %41, %42 : vector<2x32xf32>
    %44 = math.tanh %43 : vector<2x32xf32>
    %45 = vector.extract_strided_slice %10 {offsets = [6, 0], sizes = [2, 32], strides = [1, 1]} : vector<16x32xf32> to vector<2x32xf32>
    %cst_27 = arith.constant dense<0.000000e+00> : vector<2x32xf32>
    %46 = tpu.matmul %39, %11, %cst_27 {dimension_numbers = #tpu.dot_dimension_numbers<[1], [0], [0], [1], [0, 0, 1, 1], [], []>} : vector<2x32xf32>, vector<32x32xf32>, vector<2x32xf32> -> vector<2x32xf32>
    %47 = arith.addf %45, %46 : vector<2x32xf32>
    %48 = math.tanh %47 : vector<2x32xf32>
    %49 = tpu.concatenate %48, %44 in 1 : vector<2x32xf32>, vector<2x32xf32> -> vector<2x64xf32>
    %cst_28 = arith.constant dense<0.000000e+00> : vector<2x32xf32>
    %50 = tpu.matmul %49, %12, %cst_28 {dimension_numbers = #tpu.dot_dimension_numbers<[1], [0], [0], [1], [0, 0, 1, 1], [], []>} : vector<2x64xf32>, vector<64x32xf32>, vector<2x32xf32> -> vector<2x32xf32>
    %51 = vector.broadcast %13 : vector<1x32xf32> to vector<2x32xf32>
    %52 = arith.addf %50, %51 : vector<2x32xf32>
    %53 = math.tanh %52 : vector<2x32xf32>
    %54 = vector.extract_strided_slice %10 {offsets = [8, 0], sizes = [2, 32], strides = [1, 1]} : vector<16x32xf32> to vector<2x32xf32>
    %cst_29 = arith.constant dense<0.000000e+00> : vector<2x32xf32>
    %55 = tpu.matmul %48, %11, %cst_29 {dimension_numbers = #tpu.dot_dimension_numbers<[1], [0], [0], [1], [0, 0, 1, 1], [], []>} : vector<2x32xf32>, vector<32x32xf32>, vector<2x32xf32> -> vector<2x32xf32>
    %56 = arith.addf %54, %55 : vector<2x32xf32>
    %57 = math.tanh %56 : vector<2x32xf32>
    %58 = tpu.concatenate %57, %53 in 1 : vector<2x32xf32>, vector<2x32xf32> -> vector<2x64xf32>
    %cst_30 = arith.constant dense<0.000000e+00> : vector<2x32xf32>
    %59 = tpu.matmul %58, %12, %cst_30 {dimension_numbers = #tpu.dot_dimension_numbers<[1], [0], [0], [1], [0, 0, 1, 1], [], []>} : vector<2x64xf32>, vector<64x32xf32>, vector<2x32xf32> -> vector<2x32xf32>
    %60 = vector.broadcast %13 : vector<1x32xf32> to vector<2x32xf32>
    %61 = arith.addf %59, %60 : vector<2x32xf32>
    %62 = math.tanh %61 : vector<2x32xf32>
    %63 = vector.extract_strided_slice %10 {offsets = [10, 0], sizes = [2, 32], strides = [1, 1]} : vector<16x32xf32> to vector<2x32xf32>
    %cst_31 = arith.constant dense<0.000000e+00> : vector<2x32xf32>
    %64 = tpu.matmul %57, %11, %cst_31 {dimension_numbers = #tpu.dot_dimension_numbers<[1], [0], [0], [1], [0, 0, 1, 1], [], []>} : vector<2x32xf32>, vector<32x32xf32>, vector<2x32xf32> -> vector<2x32xf32>
    %65 = arith.addf %63, %64 : vector<2x32xf32>
    %66 = math.tanh %65 : vector<2x32xf32>
    %67 = tpu.concatenate %66, %62 in 1 : vector<2x32xf32>, vector<2x32xf32> -> vector<2x64xf32>
    %cst_32 = arith.constant dense<0.000000e+00> : vector<2x32xf32>
    %68 = tpu.matmul %67, %12, %cst_32 {dimension_numbers = #tpu.dot_dimension_numbers<[1], [0], [0], [1], [0, 0, 1, 1], [], []>} : vector<2x64xf32>, vector<64x32xf32>, vector<2x32xf32> -> vector<2x32xf32>
    %69 = vector.broadcast %13 : vector<1x32xf32> to vector<2x32xf32>
    %70 = arith.addf %68, %69 : vector<2x32xf32>
    %71 = math.tanh %70 : vector<2x32xf32>
    %72 = vector.extract_strided_slice %10 {offsets = [12, 0], sizes = [2, 32], strides = [1, 1]} : vector<16x32xf32> to vector<2x32xf32>
    %cst_33 = arith.constant dense<0.000000e+00> : vector<2x32xf32>
    %73 = tpu.matmul %66, %11, %cst_33 {dimension_numbers = #tpu.dot_dimension_numbers<[1], [0], [0], [1], [0, 0, 1, 1], [], []>} : vector<2x32xf32>, vector<32x32xf32>, vector<2x32xf32> -> vector<2x32xf32>
    %74 = arith.addf %72, %73 : vector<2x32xf32>
    %75 = math.tanh %74 : vector<2x32xf32>
    %76 = tpu.concatenate %75, %71 in 1 : vector<2x32xf32>, vector<2x32xf32> -> vector<2x64xf32>
    %cst_34 = arith.constant dense<0.000000e+00> : vector<2x32xf32>
    %77 = tpu.matmul %76, %12, %cst_34 {dimension_numbers = #tpu.dot_dimension_numbers<[1], [0], [0], [1], [0, 0, 1, 1], [], []>} : vector<2x64xf32>, vector<64x32xf32>, vector<2x32xf32> -> vector<2x32xf32>
    %78 = vector.broadcast %13 : vector<1x32xf32> to vector<2x32xf32>
    %79 = arith.addf %77, %78 : vector<2x32xf32>
    %80 = math.tanh %79 : vector<2x32xf32>
    %81 = vector.extract_strided_slice %10 {offsets = [14, 0], sizes = [2, 32], strides = [1, 1]} : vector<16x32xf32> to vector<2x32xf32>
    %cst_35 = arith.constant dense<0.000000e+00> : vector<2x32xf32>
    %82 = tpu.matmul %75, %11, %cst_35 {dimension_numbers = #tpu.dot_dimension_numbers<[1], [0], [0], [1], [0, 0, 1, 1], [], []>} : vector<2x32xf32>, vector<32x32xf32>, vector<2x32xf32> -> vector<2x32xf32>
    %83 = arith.addf %81, %82 : vector<2x32xf32>
    %84 = math.tanh %83 : vector<2x32xf32>
    %85 = tpu.concatenate %84, %80 in 1 : vector<2x32xf32>, vector<2x32xf32> -> vector<2x64xf32>
    %cst_36 = arith.constant dense<0.000000e+00> : vector<2x32xf32>
    %86 = tpu.matmul %85, %12, %cst_36 {dimension_numbers = #tpu.dot_dimension_numbers<[1], [0], [0], [1], [0, 0, 1, 1], [], []>} : vector<2x64xf32>, vector<64x32xf32>, vector<2x32xf32> -> vector<2x32xf32>
    %87 = vector.broadcast %13 : vector<1x32xf32> to vector<2x32xf32>
    %88 = arith.addf %86, %87 : vector<2x32xf32>
    %89 = math.tanh %88 : vector<2x32xf32>
    %90 = tpu.concatenate %26, %35, %44, %53, %62, %71, %80, %89 in 0 : vector<2x32xf32>, vector<2x32xf32>, vector<2x32xf32>, vector<2x32xf32>, vector<2x32xf32>, vector<2x32xf32>, vector<2x32xf32>, vector<2x32xf32> -> vector<16x32xf32>
    %c0_37 = arith.constant 0 : index
    %c0_38 = arith.constant 0 : index
    %91 = vector.load %arg9[%c0_37, %c0_38] : memref<32x16xf32, #tpu.memory_space<vmem>>, vector<32x16xf32>
    %cst_39 = arith.constant dense<0.000000e+00> : vector<16x16xf32>
    %92 = tpu.matmul %90, %91, %cst_39 {dimension_numbers = #tpu.dot_dimension_numbers<[1], [0], [0], [1], [0, 0, 1, 1], [], []>} : vector<16x32xf32>, vector<32x16xf32>, vector<16x16xf32> -> vector<16x16xf32>
    %c0_40 = arith.constant 0 : index
    %c0_41 = arith.constant 0 : index
    %93 = vector.load %arg10[%c0_40, %c0_41] : memref<1x16xf32, #tpu.memory_space<vmem>>, vector<1x16xf32>
    %94 = vector.broadcast %93 : vector<1x16xf32> to vector<16x16xf32>
    %95 = arith.addf %92, %94 : vector<16x16xf32>
    %c0_42 = arith.constant 0 : index
    %c0_43 = arith.constant 0 : index
    %96 = vector.load %arg11[%c0_42, %c0_43] : memref<16x16xf32, #tpu.memory_space<vmem>>, vector<16x16xf32>
    tpu.vector_store %arg11[%c0_42, %c0_43], %95 {strides = array<i32>} : memref<16x16xf32, #tpu.memory_space<vmem>>, vector<16x16xf32>,
    %97 = vector.shape_cast %84 : vector<2x32xf32> to vector<1x2x32xf32>
    %98 = vector.shape_cast %89 : vector<2x32xf32> to vector<1x2x32xf32>
    %99 = tpu.concatenate %97, %98 in 0 : vector<1x2x32xf32>, vector<1x2x32xf32> -> vector<2x2x32xf32>
    %c0_44 = arith.constant 0 : index
    %c0_45 = arith.constant 0 : index
    %c0_46 = arith.constant 0 : index
    %100 = vector.load %arg12[%c0_44, %c0_45, %c0_46] : memref<2x2x32xf32, #tpu.memory_space<vmem>>, vector<2x2x32xf32>
    tpu.vector_store %arg12[%c0_44, %c0_45, %c0_46], %99 {strides = array<i32>} : memref<2x2x32xf32, #tpu.memory_space<vmem>>, vector<2x2x32xf32>,
    return
  }
}

</mosaic_0001>

<llo_original>
// kernel: tpu_custom_call.1
$region0: #{tpu_custom_call.1}
  #allocation0 [shape = 'u32[]', space=smem, size = 0x4, offset = 0x4, fixed_abs, tag = 'smem constant byte address 0x4 - core index']
  #allocation1 [shape = 'u32[72,128]{1,0:T(1,128)}', space=vmem, size = 0x9000, scoped, tag = 'internal scratch']
  %s0 = inlined_call_operand.vmem [shape: f32[16,16], index: 0, kind: input, shape index: {}]
  %s1 = inlined_call_operand.vmem [shape: f32[2,2,32], index: 1, kind: input, shape index: {}]
  %s2 = inlined_call_operand.vmem [shape: f32[16,32], index: 2, kind: input, shape index: {}]
  %s3 = inlined_call_operand.vmem [shape: f32[1,32], index: 3, kind: input, shape index: {}]
  %s4 = inlined_call_operand.vmem [shape: f32[32,32], index: 4, kind: input, shape index: {}]
  %s5 = inlined_call_operand.vmem [shape: f32[32,32], index: 5, kind: input, shape index: {}]
  %s6 = inlined_call_operand.vmem [shape: f32[1,32], index: 6, kind: input, shape index: {}]
  %s7 = inlined_call_operand.vmem [shape: f32[64,32], index: 7, kind: input, shape index: {}]
  %s8 = inlined_call_operand.vmem [shape: f32[1,32], index: 8, kind: input, shape index: {}]
  %s9 = inlined_call_operand.vmem [shape: f32[32,16], index: 9, kind: input, shape index: {}]
  %s10 = inlined_call_operand.vmem [shape: f32[1,16], index: 10, kind: input, shape index: {}]
  %s11 = inlined_call_operand.hbm [shape: f32[16,16], index: 11, kind: output, shape index: {0}]
  %s12 = inlined_call_operand.hbm [shape: f32[2,2,32], index: 12, kind: output, shape index: {1}]
  %13 = xla_tuple %s11, %s12
  %s14 = sld [smem:[#allocation0]]
  $region62: #{tpu_custom_call.1} parent=0
    _
  %s16 = ssub.s32 1, %s14
  %s17 = scalar_select 0, %s16, %s14
  $region1: #{tpu_custom_call.1} parent=0
    #allocation2 [shape = 'u8[8192]{0}', space=vmem, size = 0x2000, scoped, tag = 'output window, operand 0, single buffered']
    #allocation3 [shape = 's32[1]{0}', space=sflag, size = 0x4, scoped, tag = 'scoped memory for tpu_custom_call.1']
    #allocation4 [shape = 'u8[2048]{0}', space=vmem, size = 0x800, scoped, tag = 'output window, operand 1, single buffered']
    #allocation5 [shape = 's32[1]{0}', space=sflag, size = 0x4, scoped, tag = 'scoped memory for tpu_custom_call.1']
    %18 = vsyncpa [#allocation3], 0
    %19 = vsyncpa [#allocation5], 0
    // Predicated region
    $region2: #{tpu_custom_call.1} parent=1 // pred_check
      _
    $region3: #{tpu_custom_call.1} parent=1 // pred_check_branch
      %21 = sbr.rel (0) target = $region5
    $region4: #{tpu_custom_call.1} parent=1 // pred_region
      _
    $region5: #{tpu_custom_call.1} parent=1 // pred_fallthru
      _
    // Predicated region
    $region6: #{tpu_custom_call.1} parent=1 // pred_check
      _
    $region7: #{tpu_custom_call.1} parent=1 // pred_check_branch
      %23 = sbr.rel (0) target = $region9
    $region8: #{tpu_custom_call.1} parent=1 // pred_region
      _
    $region9: #{tpu_custom_call.1} parent=1 // pred_fallthru
      _
    // Predicated region
    $region10: #{tpu_custom_call.1} parent=1 // pred_check
      _
    $region11: #{tpu_custom_call.1} parent=1 // pred_check_branch
      %25 = sbr.rel (0) target = $region13
    $region12: #{tpu_custom_call.1} parent=1 // pred_region
      _
    $region13: #{tpu_custom_call.1} parent=1 // pred_fallthru
      _
    // Predicated region
    $region14: #{tpu_custom_call.1} parent=1 // pred_check
      _
    $region15: #{tpu_custom_call.1} parent=1 // pred_check_branch
      %27 = sbr.rel (0) target = $region17
    $region16: #{tpu_custom_call.1} parent=1 // pred_region
      _
    $region17: #{tpu_custom_call.1} parent=1 // pred_fallthru
      _
    // Predicated region
    $region18: #{tpu_custom_call.1} parent=1 // pred_check
      _
    $region19: #{tpu_custom_call.1} parent=1 // pred_check_branch
      %29 = sbr.rel (0) target = $region21
    $region20: #{tpu_custom_call.1} parent=1 // pred_region
      _
    $region21: #{tpu_custom_call.1} parent=1 // pred_fallthru
      _
    // Predicated region
    $region22: #{tpu_custom_call.1} parent=1 // pred_check
      _
    $region23: #{tpu_custom_call.1} parent=1 // pred_check_branch
      %31 = sbr.rel (0) target = $region25
    $region24: #{tpu_custom_call.1} parent=1 // pred_region
      _
    $region25: #{tpu_custom_call.1} parent=1 // pred_fallthru
      _
    // Predicated region
    $region26: #{tpu_custom_call.1} parent=1 // pred_check
      _
    $region27: #{tpu_custom_call.1} parent=1 // pred_check_branch
      %33 = sbr.rel (0) target = $region29
    $region28: #{tpu_custom_call.1} parent=1 // pred_region
      _
    $region29: #{tpu_custom_call.1} parent=1 // pred_fallthru
      _
    // Predicated region
    $region30: #{tpu_custom_call.1} parent=1 // pred_check
      _
    $region31: #{tpu_custom_call.1} parent=1 // pred_check_branch
      %35 = sbr.rel (0) target = $region33
    $region32: #{tpu_custom_call.1} parent=1 // pred_region
      _
    $region33: #{tpu_custom_call.1} parent=1 // pred_fallthru
      _
    // Predicated region
    $region34: #{tpu_custom_call.1} parent=1 // pred_check
      _
    $region35: #{tpu_custom_call.1} parent=1 // pred_check_branch
      %37 = sbr.rel (0) target = $region37
    $region36: #{tpu_custom_call.1} parent=1 // pred_region
      _
    $region37: #{tpu_custom_call.1} parent=1 // pred_fallthru
      _
    // Predicated region
    $region38: #{tpu_custom_call.1} parent=1 // pred_check
      _
    $region39: #{tpu_custom_call.1} parent=1 // pred_check_branch
      %39 = sbr.rel (0) target = $region41
    $region40: #{tpu_custom_call.1} parent=1 // pred_region
      _
    $region41: #{tpu_custom_call.1} parent=1 // pred_fallthru
      _
    // Predicated region
    $region42: #{tpu_custom_call.1} parent=1 // pred_check
      _
    $region43: #{tpu_custom_call.1} parent=1 // pred_check_branch
      %41 = sbr.rel (0) target = $region45
    $region44: #{tpu_custom_call.1} parent=1 // pred_region
      _
    $region45: #{tpu_custom_call.1} parent=1 // pred_fallthru
      _
    %v42 = vld [vmem:[%s0] sm:$0xff]
    %v43 = vld [vmem:[%s0 + $0x8] sm:$0xff]
    %v44 = vld [vmem:[%s2] sm:$0xff]
    %v45 = vld [vmem:[%s2 + $0x8] sm:$0xff]
    %v46 = vld [vmem:[%s3] sm:$0x1]
    %v48 = vperm.slane %v46, 0
    %vm50 = vcmask 130048
    %v52 = vsel %vm50, %v42, 0
    %v55 = vsel %vm50, %v43, 0
    %57 = vmatpush.msra.mxu0 0.0
    %58 = vmatpush.msra.mxu0 0.0
    %59 = vmatpush.msra.mxu0 0.0
    %60 = vmatpush.msra.mxu0 0.0
    %61 = vmatpush.msra.mxu0 0.0
    %62 = vmatpush.msra.mxu0 0.0
    %63 = vmatpush.msra.mxu0 0.0
    %64 = vmatpush.msra.mxu0 0.0
    %65 = vmatpush.msra.mxu0 0.0
    %66 = vmatpush.msra.mxu0 0.0
    %67 = vmatpush.msra.mxu0 0.0
    %68 = vmatpush.msra.mxu0 0.0
    %69 = vmatpush.msra.mxu0 0.0
    %70 = vmatpush.msra.mxu0 0.0
    %71 = vmatpush.msra.mxu0 %v45
    %72 = vmatpush.msra.mxu0 %v44
    %73 = vmatmul.f32.gmra.mxu0 %v52
    %v74 = vpop.f32.mrf.mxu0
    %v75 = vadd.f32 %v48, %v74
    %76 = vmatmul.f32.gmra.mxu0 %v55
    %v77 = vpop.f32.mrf.mxu0
    %v78 = vadd.f32 %v48, %v77
    %79 = vdwg.mxu0
    %v80 = vld [vmem:[%s4] sm:$0xff]
    %v81 = vld [vmem:[%s4 + $0x8] sm:$0xff]
    %v82 = vld [vmem:[%s4 + $0x10] sm:$0xff]
    %v83 = vld [vmem:[%s4 + $0x18] sm:$0xff]
    %v84 = vld [vmem:[%s6] sm:$0x1]
    %v86 = vperm.slane %v84, 0
    %vm88 = vcmask 261120
    %v90 = vsel %vm88, %v75, 0
    %v93 = vsel %vm88, %v78, 0
    %95 = vmatpush.msra.mxu0 0.0
    %96 = vmatpush.msra.mxu0 0.0
    %97 = vmatpush.msra.mxu0 0.0
    %98 = vmatpush.msra.mxu0 0.0
    %99 = vmatpush.msra.mxu0 0.0
    %100 = vmatpush.msra.mxu0 0.0
    %101 = vmatpush.msra.mxu0 0.0
    %102 = vmatpush.msra.mxu0 0.0
    %103 = vmatpush.msra.mxu0 0.0
    %104 = vmatpush.msra.mxu0 0.0
    %105 = vmatpush.msra.mxu0 0.0
    %106 = vmatpush.msra.mxu0 0.0
    %107 = vmatpush.msra.mxu0 %v83
    %108 = vmatpush.msra.mxu0 %v82
    %109 = vmatpush.msra.mxu0 %v81
    %110 = vmatpush.msra.mxu0 %v80
    %111 = vmatmul.f32.gmra.mxu0 %v90
    %v112 = vpop.f32.mrf.mxu0
    %v113 = vadd.f32 %v86, %v112
    %114 = vmatmul.f32.gmra.mxu0 %v93
    %v115 = vpop.f32.mrf.mxu0
    %v116 = vadd.f32 %v86, %v115
    %117 = vdwg.mxu0
    %v118 = vld [vmem:[%s5] sm:$0xff]
    %v119 = vld [vmem:[%s5 + $0x8] sm:$0xff]
    %v120 = vld [vmem:[%s5 + $0x10] sm:$0xff]
    %v121 = vld [vmem:[%s5 + $0x18] sm:$0xff]
    %v122 = vld [vmem:[%s7] sm:$0xff]
    %v123 = vld [vmem:[%s7 + $0x8] sm:$0xff]
    %v124 = vld [vmem:[%s7 + $0x10] sm:$0xff]
    %v125 = vld [vmem:[%s7 + $0x18] sm:$0xff]
    %v126 = vld [vmem:[%s7 + $0x20] sm:$0xff]
    %v127 = vld [vmem:[%s7 + $0x28] sm:$0xff]
    %v128 = vld [vmem:[%s7 + $0x30] sm:$0xff]
    %v129 = vld [vmem:[%s7 + $0x38] sm:$0xff]
    %v130 = vld [vmem:[%s8] sm:$0x1]
    %v131 = vld [vmem:[%s1] sm:$0x3]
    %s132 = scalar_lea.vmem %s1, 2
    %v133 = vld [vmem:[%s132] sm:$0x3]
    %v135 = vsel %vm88, %v131, 0
    %137 = vmatpush.msra.mxu0 0.0
    %138 = vmatpush.msra.mxu0 0.0
    %139 = vmatpush.msra.mxu0 0.0
    %140 = vmatpush.msra.mxu0 0.0
    %141 = vmatpush.msra.mxu0 0.0
    %142 = vmatpush.msra.mxu0 0.0
    %143 = vmatpush.msra.mxu0 0.0
    %144 = vmatpush.msra.mxu0 0.0
    %145 = vmatpush.msra.mxu0 0.0
    %146 = vmatpush.msra.mxu0 0.0
    %147 = vmatpush.msra.mxu0 0.0
    %148 = vmatpush.msra.mxu0 0.0
    %149 = vmatpush.msra.mxu0 %v121
    %150 = vmatpush.msra.mxu0 %v120
    %151 = vmatpush.msra.mxu0 %v119
    %152 = vmatpush.msra.mxu0 %v118
    %153 = vmatmul.f32.gmra.mxu0 %v135
    %v154 = vpop.f32.mrf.mxu0
    %v155 = vadd.f32 0.0, %v154
    %156 = vdwg.mxu0
    %v157 = vadd.f32 %v113, %v155
    %v158 = vtanh.pop %v157
    %160 = vrot.lane.b32.xlu0 %v133, 32
    %v161 = vpop.permute.xlu0 %160
    %v163 = vsel %vm88, %v158, %v161
    %v165 = vperm.slane %v130, 0
    %vm167 = vcmask 523264
    %v169 = vsel %vm167, %v163, 0
    %171 = vmatpush.msra.mxu0 0.0
    %172 = vmatpush.msra.mxu0 0.0
    %173 = vmatpush.msra.mxu0 0.0
    %174 = vmatpush.msra.mxu0 0.0
    %175 = vmatpush.msra.mxu0 0.0
    %176 = vmatpush.msra.mxu0 0.0
    %177 = vmatpush.msra.mxu0 0.0
    %178 = vmatpush.msra.mxu0 0.0
    %179 = vmatpush.msra.mxu0 %v129
    %180 = vmatpush.msra.mxu0 %v128
    %181 = vmatpush.msra.mxu0 %v127
    %182 = vmatpush.msra.mxu0 %v126
    %183 = vmatpush.msra.mxu0 %v125
    %184 = vmatpush.msra.mxu0 %v124
    %185 = vmatpush.msra.mxu0 %v123
    %186 = vmatpush.msra.mxu0 %v122
    %187 = vmatmul.f32.gmra.mxu0 %v169
    %v188 = vpop.f32.mrf.mxu0
    %v189 = vadd.f32 %v165, %v188
    %190 = vdwg.mxu0
    %v191 = vtanh.pop %v189
    %v193 = vsel %vm88, %v158, 0
    %195 = vmatpush.msra.mxu0 0.0
    %196 = vmatpush.msra.mxu0 0.0
    %197 = vmatpush.msra.mxu0 0.0
    %198 = vmatpush.msra.mxu0 0.0
    %199 = vmatpush.msra.mxu0 0.0
    %200 = vmatpush.msra.mxu0 0.0
    %201 = vmatpush.msra.mxu0 0.0
    %202 = vmatpush.msra.mxu0 0.0
    %203 = vmatpush.msra.mxu0 0.0
    %204 = vmatpush.msra.mxu0 0.0
    %205 = vmatpush.msra.mxu0 0.0
    %206 = vmatpush.msra.mxu0 0.0
    %207 = vmatpush.msra.mxu0 %v121
    %208 = vmatpush.msra.mxu0 %v120
    %209 = vmatpush.msra.mxu0 %v119
    %210 = vmatpush.msra.mxu0 %v118
    %211 = vmatmul.f32.gmra.mxu0 %v193
    %v212 = vpop.f32.mrf.mxu0
    %v213 = vadd.f32 0.0, %v212
    %214 = vdwg.mxu0
    %v216 = vrot.slane %v213, 6
    %v218 = vadd.f32 %v113, %v216
    %v219 = vtanh.pop %v218
    %v221 = vrot.slane %v191, 6
    %222 = vrot.lane.b32.xlu0 %v221, 32
    %v223 = vpop.permute.xlu0 %222
    %v225 = vsel %vm88, %v219, %v223
    %v227 = vrot.slane %v225, 2
    %v228 = vsel %vm167, %v227, 0
    %230 = vmatpush.msra.mxu0 0.0
    %231 = vmatpush.msra.mxu0 0.0
    %232 = vmatpush.msra.mxu0 0.0
    %233 = vmatpush.msra.mxu0 0.0
    %234 = vmatpush.msra.mxu0 0.0
    %235 = vmatpush.msra.mxu0 0.0
    %236 = vmatpush.msra.mxu0 0.0
    %237 = vmatpush.msra.mxu0 0.0
    %238 = vmatpush.msra.mxu0 %v129
    %239 = vmatpush.msra.mxu0 %v128
    %240 = vmatpush.msra.mxu0 %v127
    %241 = vmatpush.msra.mxu0 %v126
    %242 = vmatpush.msra.mxu0 %v125
    %243 = vmatpush.msra.mxu0 %v124
    %244 = vmatpush.msra.mxu0 %v123
    %245 = vmatpush.msra.mxu0 %v122
    %246 = vmatmul.f32.gmra.mxu0 %v228
    %v247 = vpop.f32.mrf.mxu0
    %v248 = vadd.f32 %v165, %v247
    %249 = vdwg.mxu0
    %v250 = vtanh.pop %v248
    %v252 = vrot.slane %v219, 2
    %v253 = vsel %vm88, %v252, 0
    %255 = vmatpush.msra.mxu0 0.0
    %256 = vmatpush.msra.mxu0 0.0
    %257 = vmatpush.msra.mxu0 0.0
    %258 = vmatpush.msra.mxu0 0.0
    %259 = vmatpush.msra.mxu0 0.0
    %260 = vmatpush.msra.mxu0 0.0
    %261 = vmatpush.msra.mxu0 0.0
    %262 = vmatpush.msra.mxu0 0.0
    %263 = vmatpush.msra.mxu0 0.0
    %264 = vmatpush.msra.mxu0 0.0
    %265 = vmatpush.msra.mxu0 0.0
    %266 = vmatpush.msra.mxu0 0.0
    %267 = vmatpush.msra.mxu0 %v121
    %268 = vmatpush.msra.mxu0 %v120
    %269 = vmatpush.msra.mxu0 %v119
    %270 = vmatpush.msra.mxu0 %v118
    %271 = vmatmul.f32.gmra.mxu0 %v253
    %v272 = vpop.f32.mrf.mxu0
    %v273 = vadd.f32 0.0, %v272
    %274 = vdwg.mxu0
    %v276 = vrot.slane %v273, 4
    %v278 = vadd.f32 %v113, %v276
    %v279 = vtanh.pop %v278
    %v281 = vrot.slane %v250, 4
    %282 = vrot.lane.b32.xlu0 %v281, 32
    %v283 = vpop.permute.xlu0 %282
    %v285 = vsel %vm88, %v279, %v283
    %v287 = vrot.slane %v285, 4
    %v288 = vsel %vm167, %v287, 0
    %290 = vmatpush.msra.mxu0 0.0
    %291 = vmatpush.msra.mxu0 0.0
    %292 = vmatpush.msra.mxu0 0.0
    %293 = vmatpush.msra.mxu0 0.0
    %294 = vmatpush.msra.mxu0 0.0
    %295 = vmatpush.msra.mxu0 0.0
    %296 = vmatpush.msra.mxu0 0.0
    %297 = vmatpush.msra.mxu0 0.0
    %298 = vmatpush.msra.mxu0 %v129
    %299 = vmatpush.msra.mxu0 %v128
    %300 = vmatpush.msra.mxu0 %v127
    %301 = vmatpush.msra.mxu0 %v126
    %302 = vmatpush.msra.mxu0 %v125
    %303 = vmatpush.msra.mxu0 %v124
    %304 = vmatpush.msra.mxu0 %v123
    %305 = vmatpush.msra.mxu0 %v122
    %306 = vmatmul.f32.gmra.mxu0 %v288
    %v307 = vpop.f32.mrf.mxu0
    %v308 = vadd.f32 %v165, %v307
    %309 = vdwg.mxu0
    %v310 = vtanh.pop %v308
    %v312 = vrot.slane %v279, 4
    %v313 = vsel %vm88, %v312, 0
    %315 = vmatpush.msra.mxu0 0.0
    %316 = vmatpush.msra.mxu0 0.0
    %317 = vmatpush.msra.mxu0 0.0
    %318 = vmatpush.msra.mxu0 0.0
    %319 = vmatpush.msra.mxu0 0.0
    %320 = vmatpush.msra.mxu0 0.0
    %321 = vmatpush.msra.mxu0 0.0
    %322 = vmatpush.msra.mxu0 0.0
    %323 = vmatpush.msra.mxu0 0.0
    %324 = vmatpush.msra.mxu0 0.0
    %325 = vmatpush.msra.mxu0 0.0
    %326 = vmatpush.msra.mxu0 0.0
    %327 = vmatpush.msra.mxu0 %v121
    %328 = vmatpush.msra.mxu0 %v120
    %329 = vmatpush.msra.mxu0 %v119
    %330 = vmatpush.msra.mxu0 %v118
    %331 = vmatmul.f32.gmra.mxu0 %v313
    %v332 = vpop.f32.mrf.mxu0
    %v333 = vadd.f32 0.0, %v332
    %334 = vdwg.mxu0
    %v336 = vrot.slane %v333, 2
    %v338 = vadd.f32 %v113, %v336
    %v339 = vtanh.pop %v338
    %v341 = vrot.slane %v310, 2
    %342 = vrot.lane.b32.xlu0 %v341, 32
    %v343 = vpop.permute.xlu0 %342
    %v345 = vsel %vm88, %v339, %v343
    %v347 = vrot.slane %v345, 6
    %v348 = vsel %vm167, %v347, 0
    %350 = vmatpush.msra.mxu0 0.0
    %351 = vmatpush.msra.mxu0 0.0
    %352 = vmatpush.msra.mxu0 0.0
    %353 = vmatpush.msra.mxu0 0.0
    %354 = vmatpush.msra.mxu0 0.0
    %355 = vmatpush.msra.mxu0 0.0
    %356 = vmatpush.msra.mxu0 0.0
    %357 = vmatpush.msra.mxu0 0.0
    %358 = vmatpush.msra.mxu0 %v129
    %359 = vmatpush.msra.mxu0 %v128
    %360 = vmatpush.msra.mxu0 %v127
    %361 = vmatpush.msra.mxu0 %v126
    %362 = vmatpush.msra.mxu0 %v125
    %363 = vmatpush.msra.mxu0 %v124
    %364 = vmatpush.msra.mxu0 %v123
    %365 = vmatpush.msra.mxu0 %v122
    %366 = vmatmul.f32.gmra.mxu0 %v348
    %v367 = vpop.f32.mrf.mxu0
    %v368 = vadd.f32 %v165, %v367
    %369 = vdwg.mxu0
    %v370 = vtanh.pop %v368
    %v372 = vrot.slane %v339, 6
    %v373 = vsel %vm88, %v372, 0
    %375 = vmatpush.msra.mxu0 0.0
    %376 = vmatpush.msra.mxu0 0.0
    %377 = vmatpush.msra.mxu0 0.0
    %378 = vmatpush.msra.mxu0 0.0
    %379 = vmatpush.msra.mxu0 0.0
    %380 = vmatpush.msra.mxu0 0.0
    %381 = vmatpush.msra.mxu0 0.0
    %382 = vmatpush.msra.mxu0 0.0
    %383 = vmatpush.msra.mxu0 0.0
    %384 = vmatpush.msra.mxu0 0.0
    %385 = vmatpush.msra.mxu0 0.0
    %386 = vmatpush.msra.mxu0 0.0
    %387 = vmatpush.msra.mxu0 %v121
    %388 = vmatpush.msra.mxu0 %v120
    %389 = vmatpush.msra.mxu0 %v119
    %390 = vmatpush.msra.mxu0 %v118
    %391 = vmatmul.f32.gmra.mxu0 %v373
    %v392 = vpop.f32.mrf.mxu0
    %v393 = vadd.f32 0.0, %v392
    %394 = vdwg.mxu0
    %v395 = vadd.f32 %v116, %v393
    %v396 = vtanh.pop %v395
    %398 = vrot.lane.b32.xlu0 %v370, 32
    %v399 = vpop.permute.xlu0 %398
    %v401 = vsel %vm88, %v396, %v399
    %v403 = vsel %vm167, %v401, 0
    %405 = vmatpush.msra.mxu0 0.0
    %406 = vmatpush.msra.mxu0 0.0
    %407 = vmatpush.msra.mxu0 0.0
    %408 = vmatpush.msra.mxu0 0.0
    %409 = vmatpush.msra.mxu0 0.0
    %410 = vmatpush.msra.mxu0 0.0
    %411 = vmatpush.msra.mxu0 0.0
    %412 = vmatpush.msra.mxu0 0.0
    %413 = vmatpush.msra.mxu0 %v129
    %414 = vmatpush.msra.mxu0 %v128
    %415 = vmatpush.msra.mxu0 %v127
    %416 = vmatpush.msra.mxu0 %v126
    %417 = vmatpush.msra.mxu0 %v125
    %418 = vmatpush.msra.mxu0 %v124
    %419 = vmatpush.msra.mxu0 %v123
    %420 = vmatpush.msra.mxu0 %v122
    %421 = vmatmul.f32.gmra.mxu0 %v403
    %v422 = vpop.f32.mrf.mxu0
    %v423 = vadd.f32 %v165, %v422
    %424 = vdwg.mxu0
    %v425 = vtanh.pop %v423
    %v427 = vsel %vm88, %v396, 0
    %429 = vmatpush.msra.mxu0 0.0
    %430 = vmatpush.msra.mxu0 0.0
    %431 = vmatpush.msra.mxu0 0.0
    %432 = vmatpush.msra.mxu0 0.0
    %433 = vmatpush.msra.mxu0 0.0
    %434 = vmatpush.msra.mxu0 0.0
    %435 = vmatpush.msra.mxu0 0.0
    %436 = vmatpush.msra.mxu0 0.0
    %437 = vmatpush.msra.mxu0 0.0
    %438 = vmatpush.msra.mxu0 0.0
    %439 = vmatpush.msra.mxu0 0.0
    %440 = vmatpush.msra.mxu0 0.0
    %441 = vmatpush.msra.mxu0 %v121
    %442 = vmatpush.msra.mxu0 %v120
    %443 = vmatpush.msra.mxu0 %v119
    %444 = vmatpush.msra.mxu0 %v118
    %445 = vmatmul.f32.gmra.mxu0 %v427
    %v446 = vpop.f32.mrf.mxu0
    %v447 = vadd.f32 0.0, %v446
    %448 = vdwg.mxu0
    %v450 = vrot.slane %v447, 6
    %v452 = vadd.f32 %v116, %v450
    %v453 = vtanh.pop %v452
    %v455 = vrot.slane %v425, 6
    %456 = vrot.lane.b32.xlu0 %v455, 32
    %v457 = vpop.permute.xlu0 %456
    %v459 = vsel %vm88, %v453, %v457
    %v461 = vrot.slane %v459, 2
    %v462 = vsel %vm167, %v461, 0
    %464 = vmatpush.msra.mxu0 0.0
    %465 = vmatpush.msra.mxu0 0.0
    %466 = vmatpush.msra.mxu0 0.0
    %467 = vmatpush.msra.mxu0 0.0
    %468 = vmatpush.msra.mxu0 0.0
    %469 = vmatpush.msra.mxu0 0.0
    %470 = vmatpush.msra.mxu0 0.0
    %471 = vmatpush.msra.mxu0 0.0
    %472 = vmatpush.msra.mxu0 %v129
    %473 = vmatpush.msra.mxu0 %v128
    %474 = vmatpush.msra.mxu0 %v127
    %475 = vmatpush.msra.mxu0 %v126
    %476 = vmatpush.msra.mxu0 %v125
    %477 = vmatpush.msra.mxu0 %v124
    %478 = vmatpush.msra.mxu0 %v123
    %479 = vmatpush.msra.mxu0 %v122
    %480 = vmatmul.f32.gmra.mxu0 %v462
    %v481 = vpop.f32.mrf.mxu0
    %v482 = vadd.f32 %v165, %v481
    %483 = vdwg.mxu0
    %v484 = vtanh.pop %v482
    %v486 = vrot.slane %v453, 2
    %v487 = vsel %vm88, %v486, 0
    %489 = vmatpush.msra.mxu0 0.0
    %490 = vmatpush.msra.mxu0 0.0
    %491 = vmatpush.msra.mxu0 0.0
    %492 = vmatpush.msra.mxu0 0.0
    %493 = vmatpush.msra.mxu0 0.0
    %494 = vmatpush.msra.mxu0 0.0
    %495 = vmatpush.msra.mxu0 0.0
    %496 = vmatpush.msra.mxu0 0.0
    %497 = vmatpush.msra.mxu0 0.0
    %498 = vmatpush.msra.mxu0 0.0
    %499 = vmatpush.msra.mxu0 0.0
    %500 = vmatpush.msra.mxu0 0.0
    %501 = vmatpush.msra.mxu0 %v121
    %502 = vmatpush.msra.mxu0 %v120
    %503 = vmatpush.msra.mxu0 %v119
    %504 = vmatpush.msra.mxu0 %v118
    %505 = vmatmul.f32.gmra.mxu0 %v487
    %v506 = vpop.f32.mrf.mxu0
    %v507 = vadd.f32 0.0, %v506
    %508 = vdwg.mxu0
    %v510 = vrot.slane %v507, 4
    %v512 = vadd.f32 %v116, %v510
    %v513 = vtanh.pop %v512
    %v515 = vrot.slane %v484, 4
    %516 = vrot.lane.b32.xlu0 %v515, 32
    %v517 = vpop.permute.xlu0 %516
    %v519 = vsel %vm88, %v513, %v517
    %v521 = vrot.slane %v519, 4
    %v522 = vsel %vm167, %v521, 0
    %524 = vmatpush.msra.mxu0 0.0
    %525 = vmatpush.msra.mxu0 0.0
    %526 = vmatpush.msra.mxu0 0.0
    %527 = vmatpush.msra.mxu0 0.0
    %528 = vmatpush.msra.mxu0 0.0
    %529 = vmatpush.msra.mxu0 0.0
    %530 = vmatpush.msra.mxu0 0.0
    %531 = vmatpush.msra.mxu0 0.0
    %532 = vmatpush.msra.mxu0 %v129
    %533 = vmatpush.msra.mxu0 %v128
    %534 = vmatpush.msra.mxu0 %v127
    %535 = vmatpush.msra.mxu0 %v126
    %536 = vmatpush.msra.mxu0 %v125
    %537 = vmatpush.msra.mxu0 %v124
    %538 = vmatpush.msra.mxu0 %v123
    %539 = vmatpush.msra.mxu0 %v122
    %540 = vmatmul.f32.gmra.mxu0 %v522
    %v541 = vpop.f32.mrf.mxu0
    %v542 = vadd.f32 %v165, %v541
    %543 = vdwg.mxu0
    %v544 = vtanh.pop %v542
    %v546 = vrot.slane %v513, 4
    %v547 = vsel %vm88, %v546, 0
    %549 = vmatpush.msra.mxu0 0.0
    %550 = vmatpush.msra.mxu0 0.0
    %551 = vmatpush.msra.mxu0 0.0
    %552 = vmatpush.msra.mxu0 0.0
    %553 = vmatpush.msra.mxu0 0.0
    %554 = vmatpush.msra.mxu0 0.0
    %555 = vmatpush.msra.mxu0 0.0
    %556 = vmatpush.msra.mxu0 0.0
    %557 = vmatpush.msra.mxu0 0.0
    %558 = vmatpush.msra.mxu0 0.0
    %559 = vmatpush.msra.mxu0 0.0
    %560 = vmatpush.msra.mxu0 0.0
    %561 = vmatpush.msra.mxu0 %v121
    %562 = vmatpush.msra.mxu0 %v120
    %563 = vmatpush.msra.mxu0 %v119
    %564 = vmatpush.msra.mxu0 %v118
    %565 = vmatmul.f32.gmra.mxu0 %v547
    %v566 = vpop.f32.mrf.mxu0
    %v567 = vadd.f32 0.0, %v566
    %568 = vdwg.mxu0
    %v570 = vrot.slane %v567, 2
    %v572 = vadd.f32 %v116, %v570
    %v573 = vtanh.pop %v572
    %v575 = vrot.slane %v544, 2
    %576 = vrot.lane.b32.xlu0 %v575, 32
    %v577 = vpop.permute.xlu0 %576
    %v579 = vsel %vm88, %v573, %v577
    %v581 = vrot.slane %v579, 6
    %v582 = vsel %vm167, %v581, 0
    %584 = vmatpush.msra.mxu0 0.0
    %585 = vmatpush.msra.mxu0 0.0
    %586 = vmatpush.msra.mxu0 0.0
    %587 = vmatpush.msra.mxu0 0.0
    %588 = vmatpush.msra.mxu0 0.0
    %589 = vmatpush.msra.mxu0 0.0
    %590 = vmatpush.msra.mxu0 0.0
    %591 = vmatpush.msra.mxu0 0.0
    %592 = vmatpush.msra.mxu0 %v129
    %593 = vmatpush.msra.mxu0 %v128
    %594 = vmatpush.msra.mxu0 %v127
    %595 = vmatpush.msra.mxu0 %v126
    %596 = vmatpush.msra.mxu0 %v125
    %597 = vmatpush.msra.mxu0 %v124
    %598 = vmatpush.msra.mxu0 %v123
    %599 = vmatpush.msra.mxu0 %v122
    %600 = vmatmul.f32.gmra.mxu0 %v582
    %v601 = vpop.f32.mrf.mxu0
    %v602 = vadd.f32 %v165, %v601
    %603 = vdwg.mxu0
    %v604 = vtanh.pop %v602
    %v605 = vrot.slane %v250, 6
    %v607 = vrot.slane %v310, 4
    %v609 = vrot.slane %v370, 2
    %v611 = vrot.slane %v484, 6
    %v613 = vrot.slane %v544, 4
    %v616 = vrot.slane %v604, 2
    %vm618 = vcmask 1041408
    %v619 = vsel %vm618, %v191, %v605
    %vm620 = vcmask 1043456
    %v621 = vsel %vm620, %v619, %v607
    %vm622 = vcmask 1045504
    %v623 = vsel %vm622, %v621, %v609
    %v624 = vsel %vm618, %v425, %v611
    %v625 = vsel %vm620, %v624, %v613
    %v626 = vsel %vm622, %v625, %v616
    %v627 = vld [vmem:[%s9] sm:$0xff]
    %v628 = vld [vmem:[%s9 + $0x8] sm:$0xff]
    %v629 = vld [vmem:[%s9 + $0x10] sm:$0xff]
    %v630 = vld [vmem:[%s9 + $0x18] sm:$0xff]
    %v631 = vld [vmem:[%s10] sm:$0x1]
    %v633 = vperm.slane %v631, 0
    %v636 = vsel %vm88, %v623, 0
    %v639 = vsel %vm88, %v626, 0
    %641 = vmatpush.msra.mxu0 0.0
    %642 = vmatpush.msra.mxu0 0.0
    %643 = vmatpush.msra.mxu0 0.0
    %644 = vmatpush.msra.mxu0 0.0
    %645 = vmatpush.msra.mxu0 0.0
    %646 = vmatpush.msra.mxu0 0.0
    %647 = vmatpush.msra.mxu0 0.0
    %648 = vmatpush.msra.mxu0 0.0
    %649 = vmatpush.msra.mxu0 0.0
    %650 = vmatpush.msra.mxu0 0.0
    %651 = vmatpush.msra.mxu0 0.0
    %652 = vmatpush.msra.mxu0 0.0
    %653 = vmatpush.msra.mxu0 %v630
    %654 = vmatpush.msra.mxu0 %v629
    %655 = vmatpush.msra.mxu0 %v628
    %656 = vmatpush.msra.mxu0 %v627
    %657 = vmatmul.f32.gmra.mxu0 %v636
    %v658 = vpop.f32.mrf.mxu0
    %v659 = vadd.f32 %v633, %v658
    %660 = vmatmul.f32.gmra.mxu0 %v639
    %v661 = vpop.f32.mrf.mxu0
    %v662 = vadd.f32 %v633, %v661
    %663 = vdwg.mxu0
    %664 = vst.msk [vmem:[#allocation2] sm:$0xff] %vm50, %v659
    %665 = vst.msk [vmem:[#allocation2 + $0x8] sm:$0xff] %vm50, %v662
    %vm666 = vcmask 261126
    %667 = vst.msk [vmem:[#allocation4 - $0x6] sm:$0xc0] %vm666, %v573
    %668 = vst.msk [vmem:[#allocation4 - $0x4] sm:$0xc0] %vm666, %v616
    // Predicated region
    $region46: #{tpu_custom_call.1} parent=1 // pred_check
      _
    $region47: #{tpu_custom_call.1} parent=1 // pred_check_branch
      %670 = sbr.rel (0) target = $region49
    $region48: #{tpu_custom_call.1} parent=1 // pred_region
      %672 = vsyncadd [#allocation3], 0
      %s673 = sshll.u32 [#allocation2], 4
      %s674 = int_to_ptr.vmem [resolvable:$true] %s673
      %s675 = sshll.u32 %s11, 4
      %s676 = int_to_ptr.hbm [resolvable:$true] %s675
      %681 = dma.vmem_to_hbm [thread:$0]  %s674, 256, %s676, [#allocation3], 128, 128, 8
    $region49: #{tpu_custom_call.1} parent=1 // pred_fallthru
      _
    // Predicated region
    $region50: #{tpu_custom_call.1} parent=1 // pred_check
      _
    $region51: #{tpu_custom_call.1} parent=1 // pred_check_branch
      %683 = sbr.rel (0) target = $region53
    $region52: #{tpu_custom_call.1} parent=1 // pred_region
      %685 = vsyncadd [#allocation5], 0
      %s686 = sshll.u32 [#allocation4], 4
      %s687 = int_to_ptr.vmem [resolvable:$true] %s686
      %s688 = sshll.u32 %s12, 4
      %s689 = int_to_ptr.hbm [resolvable:$true] %s688
      %694 = dma.vmem_to_hbm [thread:$0]  %s687, 64, %s689, [#allocation5], 32, 32, 2
    $region53: #{tpu_custom_call.1} parent=1 // pred_fallthru
      _
    // Predicated region
    $region54: #{tpu_custom_call.1} parent=1 // pred_check
      _
    $region55: #{tpu_custom_call.1} parent=1 // pred_check_branch
      %696 = sbr.rel (0) target = $region57
    $region56: #{tpu_custom_call.1} parent=1 // pred_region
      %698 = dma.done [#allocation3], 256
    $region57: #{tpu_custom_call.1} parent=1 // pred_fallthru
      _
    // Predicated region
    $region58: #{tpu_custom_call.1} parent=1 // pred_check
      _
    $region59: #{tpu_custom_call.1} parent=1 // pred_check_branch
      %700 = sbr.rel (0) target = $region61
    $region60: #{tpu_custom_call.1} parent=1 // pred_region
      %702 = dma.done [#allocation5], 64
    $region61: #{tpu_custom_call.1} parent=1 // pred_fallthru
      _
    %703 = vsyncpa [#allocation3], 1
    %704 = vsyncpa [#allocation5], 1

</llo_original>
